<compile_context>
chip_gen: v5e
topology: v5e:2x2
jax: 0.10.0
libtpu: 0.0.40
codegen_flags: <defaults>
</compile_context>

<pallas_src>
import functools

import jax
import jax.numpy as jnp
import numpy as np
from jax import lax
from jax.experimental import pallas as pl
from jax.experimental.pallas import tpu as pltpu

_VMEM_LIMIT = 48 * 1024 * 1024  # safe on v5e/v6e (128 MiB) and v7x (64 MiB)


def _round_up(x, m):
    return (x + m - 1) // m * m


def _pick_tile_m(m, cap):
    """Largest multiple-of-8 divisor of m that is <= cap (else the whole m)."""
    if m <= cap:
        return m
    for tm in range(cap - cap % 8, 7, -8):
        if m % tm == 0:
            return tm
    return m


# ---------------------------------------------------------------------------
# Kernel 1: per-phase conv-as-matmul (bf16 in, f32 acc) + BN stat accumulation
# ---------------------------------------------------------------------------
def _convt_matmul_stats_kernel(x_ref, w_ref, y_ref, sum_ref, ssq_ref):
    m_idx = pl.program_id(1)

    # [TM, K] @ [K, Cout] on the MXU, f32 accumulation.
    y = jnp.dot(x_ref[0], w_ref[0], preferred_element_type=jnp.float32)
    y_ref[0] = y

    @pl.when(m_idx == 0)
    def _init():
        sum_ref[...] = jnp.zeros_like(sum_ref)
        ssq_ref[...] = jnp.zeros_like(ssq_ref)

    # Per-channel sum / sum-of-squares accumulated across all M tiles so the
    # BatchNorm batch statistics stay exact under tiling.
    sum_ref[0] = sum_ref[0] + jnp.sum(y, axis=0, keepdims=True)
    ssq_ref[0] = ssq_ref[0] + jnp.sum(y * y, axis=0, keepdims=True)


# ---------------------------------------------------------------------------
# Kernel 2: fused BatchNorm affine + activation (f32 epilogue)
# ---------------------------------------------------------------------------
def _bn_act_kernel(y_ref, scale_ref, shift_ref, o_ref, *, slope):
    z = y_ref[0] * scale_ref[...] + shift_ref[...]
    o_ref[0] = jnp.where(z > 0, z, slope * z)


# ---------------------------------------------------------------------------
# JAX glue: phase decomposition of ConvTranspose2d(k=4, s=2, p=1)
# ---------------------------------------------------------------------------
def _phase_inputs(x_nhwc, w_iokk):
    """Build per-phase im2col activations and packed weights.

    out[n, co, 2a+ph, 2b+pw] = sum_{r,s,ci} xpad[n, a+ph+r, b+pw+s, ci]
                                           * W[ci, co, 3-ph-2r, 3-pw-2s]
    Returns x_all [4, M, Kp] bf16, w_all [4, Kp, Cout] bf16, M.
    Phase index p = 2*ph + pw; rows ordered (n, a, b); cols ordered (r, s, ci).
    """
    n, h, w, cin = x_nhwc.shape
    cout = w_iokk.shape[1]
    m = n * h * w
    k = 4 * cin

    xpad = jnp.pad(x_nhwc, ((0, 0), (1, 1), (1, 1), (0, 0)))
    xs, ws = [], []
    for ph in (0, 1):
        for pw in (0, 1):
            taps = []
            for r in (0, 1):
                for s in (0, 1):
                    taps.append(xpad[:, ph + r:ph + r + h, pw + s:pw + s + w, :])
            xp = jnp.stack(taps, axis=3).reshape(m, k)       # cols = (r, s, ci)
            kh = np.array([3 - ph, 1 - ph])                  # window row r -> tap kh
            kw = np.array([3 - pw, 1 - pw])                  # window col s -> tap kw
            wsub = w_iokk[:, :, kh, :][:, :, :, kw]          # [ci, co, r, s]
            wp = jnp.transpose(wsub, (2, 3, 0, 1)).reshape(k, cout)
            xs.append(xp)
            ws.append(wp)

    x_all = jnp.stack(xs).astype(jnp.bfloat16)               # [4, M, K]
    w_all = jnp.stack(ws).astype(jnp.bfloat16)               # [4, K, Cout]

    # Zero-pad K to a multiple of 128 so the MXU contraction is fully aligned.
    kp = _round_up(k, 128)
    if kp != k:
        x_all = jnp.pad(x_all, ((0, 0), (0, 0), (0, kp - k)))
        w_all = jnp.pad(w_all, ((0, 0), (0, kp - k), (0, 0)))
    return x_all, w_all, m


# ---------------------------------------------------------------------------
# Up block forward pass
# ---------------------------------------------------------------------------
def up_forward(x_nchw, params, *, act="relu", use_dropout=False,
               eps=1e-5, tile_m=512):
    """ConvTranspose2d(4,2,1) -> BatchNorm2d (batch stats) -> ReLU/LeakyReLU."""
    w = params["w"]                           # [Cin, Cout, 4, 4] (PyTorch layout)
    gamma, beta = params["gamma"], params["beta"]
    cin, cout = w.shape[0], w.shape[1]
    n, cin_x, h, wdt = x_nchw.shape
    assert cin_x == cin

    x_nhwc = jnp.transpose(x_nchw, (0, 2, 3, 1)).astype(jnp.float32)
    x_all, w_all, m = _phase_inputs(x_nhwc, w)
    kp = x_all.shape[-1]

    tm = _pick_tile_m(m, tile_m)
    grid = (4, m // tm)

    # ---- pass 1: conv matmul + global batch-stat accumulation ---------------
    y_all, sums, ssqs = pl.pallas_call(
        _convt_matmul_stats_kernel,
        out_shape=(
            jax.ShapeDtypeStruct((4, m, cout), jnp.float32),
            jax.ShapeDtypeStruct((4, 1, cout), jnp.float32),
            jax.ShapeDtypeStruct((4, 1, cout), jnp.float32),
        ),
        grid=grid,
        in_specs=[
            pl.BlockSpec((1, tm, kp), lambda p, i: (p, i, 0)),
            pl.BlockSpec((1, kp, cout), lambda p, i: (p, 0, 0)),  # resident weight
        ],
        out_specs=(
            pl.BlockSpec((1, tm, cout), lambda p, i: (p, i, 0)),
            pl.BlockSpec((1, 1, cout), lambda p, i: (p, 0, 0)),   # sum accumulator
            pl.BlockSpec((1, 1, cout), lambda p, i: (p, 0, 0)),   # sumsq accumulator
        ),
        compiler_params=pltpu.CompilerParams(
            dimension_semantics=("parallel", "arbitrary"),
            vmem_limit_bytes=_VMEM_LIMIT),
    )(x_all, w_all)

    # ---- tiny per-channel stats -> affine scale/shift (plain JAX) -----------
    # Conv bias is omitted in the kernels: BatchNorm's mean subtraction cancels
    # it exactly (it is still applied in the reference).
    cnt = jnp.float32(4 * m)                  # = N * (2H) * (2W)
    mean = jnp.sum(sums[:, 0, :], axis=0) / cnt
    var = jnp.maximum(jnp.sum(ssqs[:, 0, :], axis=0) / cnt - mean * mean, 0.0)
    scale = gamma * lax.rsqrt(var + eps)
    shift = beta - mean * scale

    # ---- pass 2: fused BN affine + activation --------------------------------
    slope = 0.0 if act == "relu" else 0.2
    out_all = pl.pallas_call(
        functools.partial(_bn_act_kernel, slope=slope),
        out_shape=jax.ShapeDtypeStruct((4, m, cout), jnp.float32),
        grid=grid,
        in_specs=[
            pl.BlockSpec((1, tm, cout), lambda p, i: (p, i, 0)),
            pl.BlockSpec((1, cout), lambda p, i: (0, 0)),
            pl.BlockSpec((1, cout), lambda p, i: (0, 0)),
        ],
        out_specs=pl.BlockSpec((1, tm, cout), lambda p, i: (p, i, 0)),
        compiler_params=pltpu.CompilerParams(
            dimension_semantics=("parallel", "parallel"),
            vmem_limit_bytes=_VMEM_LIMIT),
    )(y_all, scale.reshape(1, cout), shift.reshape(1, cout))

    # ---- interleave the 4 phases back into NHWC, then NCHW ------------------
    o = out_all.reshape(2, 2, n, h, wdt, cout)                 # [ph, pw, n, a, b, c]
    o = jnp.transpose(o, (2, 3, 0, 4, 1, 5)).reshape(n, 2 * h, 2 * wdt, cout)

    # TODO(synk): training-mode Dropout(0.2) is stochastic; with the module
    # default use_dropout=False (and in eval mode) it is the identity.
    del use_dropout

    return jnp.transpose(o, (0, 3, 1, 2))


# ---------------------------------------------------------------------------
# Deterministic parameters (same shapes as the nn.Module __init__)
# ---------------------------------------------------------------------------
def init_params(key, in_channels, out_channels):
    kw, kb, kg, kbe = jax.random.split(key, 4)
    fan_in = in_channels * 16
    w = jax.random.normal(kw, (in_channels, out_channels, 4, 4),
                          jnp.float32) * jnp.sqrt(2.0 / fan_in)
    b = jax.random.normal(kb, (out_channels,), jnp.float32) * 0.1
    gamma = 1.0 + 0.1 * jax.random.normal(kg, (out_channels,), jnp.float32)
    beta = 0.1 * jax.random.normal(kbe, (out_channels,), jnp.float32)
    return dict(w=w, b=b, gamma=gamma, beta=beta)


# ---------------------------------------------------------------------------
# Pure-JAX reference (faithful to the PyTorch module, f32 HIGHEST precision)
# ---------------------------------------------------------------------------
def reference_forward(x_nchw, params, *, act="relu", eps=1e-5):
    w, b = params["w"], params["b"]
    gamma, beta = params["gamma"], params["beta"]
    x = jnp.transpose(x_nchw, (0, 2, 3, 1))
    # ConvTranspose2d(4,2,1) == stride-1 conv over the 2x-dilated input with
    # padding 2 and the spatially flipped kernel.
    w_hwio = jnp.transpose(w, (2, 3, 0, 1))[::-1, ::-1, :, :]
    y = lax.conv_general_dilated(
        x, w_hwio, window_strides=(1, 1), padding=((2, 2), (2, 2)),
        lhs_dilation=(2, 2), dimension_numbers=("NHWC", "HWIO", "NHWC"),
        precision=lax.Precision.HIGHEST)
    y = y + b.reshape(1, 1, 1, -1)
    mean = jnp.mean(y, axis=(0, 1, 2), keepdims=True)
    var = jnp.mean((y - mean) ** 2, axis=(0, 1, 2), keepdims=True)
    y = (y - mean) * lax.rsqrt(var + eps) * gamma + beta
    slope = 0.0 if act == "relu" else 0.2
    y = jnp.where(y > 0, y, slope * y)
    return jnp.transpose(y, (0, 3, 1, 2))


if __name__ == "__main__":
    key = jax.random.PRNGKey(0)
    kx, kparams = jax.random.split(key)

    N, CIN, COUT, H, W = 2, 64, 32, 16, 16
    x = jax.random.normal(kx, (N, CIN, H, W), jnp.float32)
    params = init_params(kparams, CIN, COUT)

    # tile_m=128 -> grid (4 phases, 4 M-tiles): exercises tiling + accumulation.
    out = jax.block_until_ready(up_forward(x, params, act="relu", tile_m=128))
    assert out.shape == (N, COUT, 2 * H, 2 * W), out.shape

    ref = jax.block_until_ready(reference_forward(x, params, act="relu"))
    np.testing.assert_allclose(np.asarray(out), np.asarray(ref),
                               rtol=3e-2, atol=3e-2)

    print("KERNEL_OK")
</pallas_src>

<mosaic_0001>
module attributes {stable_mosaic.version = 11 : i64} {
  func.func @_convt_matmul_stats_kernel(%arg0: i32, %arg1: i32, %arg2: memref<1x128x256xbf16, #tpu.memory_space<vmem>>, %arg3: memref<1x256x32xbf16, #tpu.memory_space<vmem>>, %arg4: memref<1x128x32xf32, #tpu.memory_space<vmem>>, %arg5: memref<1x1x32xf32, #tpu.memory_space<vmem>>, %arg6: memref<1x1x32xf32, #tpu.memory_space<vmem>>) attributes {dimension_semantics = [#tpu.dimension_semantics<parallel>, #tpu.dimension_semantics<arbitrary>], iteration_bounds = array<i64: 4, 4>, scalar_prefetch = 0 : i64, scratch_operands = 0 : i64, tpu.core_type = #tpu.core_type<tc>, window_params = [{transform_indices = @transform_0, window_bounds = array<i64: 1, 128, 256>}, {transform_indices = @transform_1, window_bounds = array<i64: 1, 256, 32>}, {transform_indices = @transform_2, window_bounds = array<i64: 1, 128, 32>}, {transform_indices = @transform_3, window_bounds = array<i64: 1, 1, 32>}, {transform_indices = @transform_4, window_bounds = array<i64: 1, 1, 32>}]} {
    %c0 = arith.constant 0 : index
    %c0_0 = arith.constant 0 : index
    %c0_1 = arith.constant 0 : index
    %0 = vector.load %arg2[%c0, %c0_0, %c0_1] : memref<1x128x256xbf16, #tpu.memory_space<vmem>>, vector<1x128x256xbf16>
    %1 = vector.shape_cast %0 : vector<1x128x256xbf16> to vector<128x256xbf16>
    %c0_2 = arith.constant 0 : index
    %c0_3 = arith.constant 0 : index
    %c0_4 = arith.constant 0 : index
    %2 = vector.load %arg3[%c0_2, %c0_3, %c0_4] : memref<1x256x32xbf16, #tpu.memory_space<vmem>>, vector<1x256x32xbf16>
    %3 = vector.shape_cast %2 : vector<1x256x32xbf16> to vector<256x32xbf16>
    %cst = arith.constant dense<0.000000e+00> : vector<128x32xf32>
    %4 = tpu.matmul %1, %3, %cst {dimension_numbers = #tpu.dot_dimension_numbers<[1], [0], [0], [1], [0, 0, 1, 1], [], []>} : vector<128x256xbf16>, vector<256x32xbf16>, vector<128x32xf32> -> vector<128x32xf32>
    %c0_5 = arith.constant 0 : index
    %c0_6 = arith.constant 0 : index
    %c0_7 = arith.constant 0 : index
    %5 = vector.load %arg4[%c0_5, %c0_6, %c0_7] : memref<1x128x32xf32, #tpu.memory_space<vmem>>, vector<1x128x32xf32>
    %6 = vector.shape_cast %5 : vector<1x128x32xf32> to vector<128x32xf32>
    %7 = vector.shape_cast %4 : vector<128x32xf32> to vector<1x128x32xf32>
    tpu.vector_store %arg4[%c0_5, %c0_6, %c0_7], %7 {strides = array<i32>} : memref<1x128x32xf32, #tpu.memory_space<vmem>>, vector<1x128x32xf32>,
    %c0_i32 = arith.constant 0 : i32
    %8 = arith.cmpi eq, %arg1, %c0_i32 : i32
    %9 = arith.extui %8 : i1 to i32
    %c0_i32_8 = arith.constant 0 : i32
    %10 = arith.cmpi ne, %9, %c0_i32_8 : i32
    scf.if %10 {
      %cst_23 = arith.constant 0.000000e+00 : f32
      %28 = vector.broadcast %cst_23 : f32 to vector<1x1x32xf32>
      %c0_24 = arith.constant 0 : index
      %c0_25 = arith.constant 0 : index
      %c0_26 = arith.constant 0 : index
      %29 = vector.load %arg5[%c0_24, %c0_25, %c0_26] : memref<1x1x32xf32, #tpu.memory_space<vmem>>, vector<1x1x32xf32>
      tpu.vector_store %arg5[%c0_24, %c0_25, %c0_26], %28 {strides = array<i32>} : memref<1x1x32xf32, #tpu.memory_space<vmem>>, vector<1x1x32xf32>,
      %cst_27 = arith.constant 0.000000e+00 : f32
      %30 = vector.broadcast %cst_27 : f32 to vector<1x1x32xf32>
      %c0_28 = arith.constant 0 : index
      %c0_29 = arith.constant 0 : index
      %c0_30 = arith.constant 0 : index
      %31 = vector.load %arg6[%c0_28, %c0_29, %c0_30] : memref<1x1x32xf32, #tpu.memory_space<vmem>>, vector<1x1x32xf32>
      tpu.vector_store %arg6[%c0_28, %c0_29, %c0_30], %30 {strides = array<i32>} : memref<1x1x32xf32, #tpu.memory_space<vmem>>, vector<1x1x32xf32>,
    } else {
    }
    %c0_9 = arith.constant 0 : index
    %c0_10 = arith.constant 0 : index
    %c0_11 = arith.constant 0 : index
    %11 = vector.load %arg5[%c0_9, %c0_10, %c0_11] : memref<1x1x32xf32, #tpu.memory_space<vmem>>, vector<1x1x32xf32>
    %12 = vector.shape_cast %11 : vector<1x1x32xf32> to vector<1x32xf32>
    %cst_12 = arith.constant dense<0.000000e+00> : vector<32xf32>
    %13 = vector.multi_reduction <add>, %4, %cst_12 [0] : vector<128x32xf32> to vector<32xf32>
    %14 = vector.shape_cast %13 : vector<32xf32> to vector<1x32xf32>
    %15 = arith.addf %12, %14 : vector<1x32xf32>
    %c0_13 = arith.constant 0 : index
    %c0_14 = arith.constant 0 : index
    %c0_15 = arith.constant 0 : index
    %16 = vector.load %arg5[%c0_13, %c0_14, %c0_15] : memref<1x1x32xf32, #tpu.memory_space<vmem>>, vector<1x1x32xf32>
    %17 = vector.shape_cast %16 : vector<1x1x32xf32> to vector<1x32xf32>
    %18 = vector.shape_cast %15 : vector<1x32xf32> to vector<1x1x32xf32>
    tpu.vector_store %arg5[%c0_13, %c0_14, %c0_15], %18 {strides = array<i32>} : memref<1x1x32xf32, #tpu.memory_space<vmem>>, vector<1x1x32xf32>,
    %c0_16 = arith.constant 0 : index
    %c0_17 = arith.constant 0 : index
    %c0_18 = arith.constant 0 : index
    %19 = vector.load %arg6[%c0_16, %c0_17, %c0_18] : memref<1x1x32xf32, #tpu.memory_space<vmem>>, vector<1x1x32xf32>
    %20 = vector.shape_cast %19 : vector<1x1x32xf32> to vector<1x32xf32>
    %21 = arith.mulf %4, %4 : vector<128x32xf32>
    %cst_19 = arith.constant dense<0.000000e+00> : vector<32xf32>
    %22 = vector.multi_reduction <add>, %21, %cst_19 [0] : vector<128x32xf32> to vector<32xf32>
    %23 = vector.shape_cast %22 : vector<32xf32> to vector<1x32xf32>
    %24 = arith.addf %20, %23 : vector<1x32xf32>
    %c0_20 = arith.constant 0 : index
    %c0_21 = arith.constant 0 : index
    %c0_22 = arith.constant 0 : index
    %25 = vector.load %arg6[%c0_20, %c0_21, %c0_22] : memref<1x1x32xf32, #tpu.memory_space<vmem>>, vector<1x1x32xf32>
    %26 = vector.shape_cast %25 : vector<1x1x32xf32> to vector<1x32xf32>
    %27 = vector.shape_cast %24 : vector<1x32xf32> to vector<1x1x32xf32>
    tpu.vector_store %arg6[%c0_20, %c0_21, %c0_22], %27 {strides = array<i32>} : memref<1x1x32xf32, #tpu.memory_space<vmem>>, vector<1x1x32xf32>,
    return
  }
  func.func @transform_0(%arg0: i32, %arg1: i32) -> (i32, i32, i32) {
    %c0_i32 = arith.constant 0 : i32
    %c0_i32_0 = arith.constant 0 : i32
    return %arg0, %arg1, %c0_i32 : i32, i32, i32
  }
  func.func @transform_1(%arg0: i32, %arg1: i32) -> (i32, i32, i32) {
    %c0_i32 = arith.constant 0 : i32
    %c0_i32_0 = arith.constant 0 : i32
    %c0_i32_1 = arith.constant 0 : i32
    return %arg0, %c0_i32, %c0_i32_0 : i32, i32, i32
  }
  func.func @transform_2(%arg0: i32, %arg1: i32) -> (i32, i32, i32) {
    %c0_i32 = arith.constant 0 : i32
    %c0_i32_0 = arith.constant 0 : i32
    return %arg0, %arg1, %c0_i32 : i32, i32, i32
  }
  func.func @transform_3(%arg0: i32, %arg1: i32) -> (i32, i32, i32) {
    %c0_i32 = arith.constant 0 : i32
    %c0_i32_0 = arith.constant 0 : i32
    %c0_i32_1 = arith.constant 0 : i32
    return %arg0, %c0_i32, %c0_i32_0 : i32, i32, i32
  }
  func.func @transform_4(%arg0: i32, %arg1: i32) -> (i32, i32, i32) {
    %c0_i32 = arith.constant 0 : i32
    %c0_i32_0 = arith.constant 0 : i32
    %c0_i32_1 = arith.constant 0 : i32
    return %arg0, %c0_i32, %c0_i32_0 : i32, i32, i32
  }
}

</mosaic_0001>

<llo_original>
// kernel: tpu_custom_call.1
$region0: #{tpu_custom_call.1}
  #allocation0 [shape = 'u32[]', space=smem, size = 0x4, offset = 0x4, fixed_abs, tag = 'smem constant byte address 0x4 - core index']
  #allocation1 [shape = 'u32[72,128]{1,0:T(1,128)}', space=vmem, size = 0x9000, scoped, tag = 'internal scratch']
  %s0 = inlined_call_operand.hbm [shape: bf16[4,512,256], index: 0, kind: input, shape index: {}]
  %s1 = inlined_call_operand.vmem [shape: bf16[4,256,32], index: 1, kind: input, shape index: {}]
  %s2 = inlined_call_operand.vmem [shape: f32[4,512,32], index: 2, kind: output, shape index: {0}]
  %s3 = inlined_call_operand.hbm [shape: f32[4,1,32], index: 3, kind: output, shape index: {1}]
  %s4 = inlined_call_operand.hbm [shape: f32[4,1,32], index: 4, kind: output, shape index: {2}]
  %5 = xla_tuple %s2, %s3, %s4
  %s6 = sld [smem:[#allocation0]]
  $region65: #{tpu_custom_call.1} parent=0
    _
  %s8 = ssub.s32 1, %s6
  %s9 = scalar_select 0, %s8, %s6
  $region1: #{tpu_custom_call.1} parent=0
    #allocation2 [shape = 'u8[131072]{0}', space=vmem, size = 0x20000, scoped, tag = 'input window, operand 0']
    #allocation3 [shape = 's32[2]{0}', space=sflag, size = 0x8, scoped, tag = 'scoped memory for tpu_custom_call.1']
    #allocation4 [shape = 's32[2]{0}', space=sflag, size = 0x8, scoped, tag = 'scoped memory for tpu_custom_call.1']
    #allocation5 [shape = 'u8[1024]{0}', space=vmem, size = 0x400, scoped, tag = 'output window, operand 1']
    #allocation6 [shape = 'u8[1024]{0}', space=vmem, size = 0x400, scoped, tag = 'output window, operand 2']
    #allocation7 [shape = 's32[2]{0}', space=sflag, size = 0x8, scoped, tag = 'scoped memory for tpu_custom_call.1']
    %10 = vsyncpa [#allocation3], 0
    %s11 = scalar_lea.sflag [#allocation3], 1
    %12 = vsyncpa %s11, 0
    %13 = vsyncpa [#allocation4], 0
    %s14 = scalar_lea.sflag [#allocation4], 1
    %15 = vsyncpa %s14, 0
    %16 = vsyncpa [#allocation7], 0
    %s17 = scalar_lea.sflag [#allocation7], 1
    %18 = vsyncpa %s17, 0
    loop: start=0, step=1, limit=18
    $region2: #{tpu_custom_call.1} parent=1 // loop_pre_header
      _
    $region3: #{tpu_custom_call.1} parent=1 // loop_header
      %s20 = sphi 0, %s24
      %p21 = scmp.ge.s32.totalorder %s20, 18
      %s27 = sphi 0, %s39
      %s28 = sphi 0, %s35
      %s29 = sphi 0, %s27
      %s30 = sphi 0, %s28
      %s31 = sphi 0, %s29
      %s32 = sphi 0, %s30
      %s44 = sphi 0, %s46
      %s47 = sphi 0, %s44
      %s48 = sphi 0, %s47
      %s64 = sphi 0, %s48
      %s70 = sphi 0, %s72
      %s73 = sphi 0, %s70
      %s74 = sphi 0, %s73
      %s90 = sphi 0, %s74
      %s98 = sphi 0, %s100
      %s101 = sphi 0, %s98
      %s102 = sphi 0, %s101
      %s118 = sphi 0, %s102
      %s124 = sphi 0, %s126
      %s127 = sphi 0, %s124
      %s128 = sphi 0, %s127
      %s144 = sphi 0, %s128
      %s150 = sphi 0, %s152
      %s153 = sphi 0, %s150
      %s154 = sphi 0, %s153
      %s170 = sphi 0, %s154
    $region4: #{tpu_custom_call.1} parent=1 // loop_header_branch
      %23 = sbr.rel (%p21) target = $region8
    $region5: #{tpu_custom_call.1} parent=1 // loop_body
      %s25 = ssub.s32 %s20, 1
      %s26 = ssub.s32 %s20, 2
      %s33 = sadd.s32 1, %s28
      %p34 = scmp.ge.s32.totalorder %s33, 4
      %s35 = scalar_select %p34, 0, %s33
      %s36 = sadd.s32 1, %s27
      %s37 = scalar_select %p34, %s36, %s27
      %p38 = scmp.ge.s32.totalorder %s37, 4
      %s39 = scalar_select %p38, 0, %s37
      %s40 = ssub.s32 %s27, %s39
      %s41 = ssub.s32 %s28, %s35
      %s42 = sor.u32 %s40, %s41
      %p43 = scmp.eq.s32.totalorder %s42, 0
      %s45 = sadd.s32 %s44, 1
      %s46 = scalar_select %p43, %s44, %s45
      %p49 = pneg %p43
      %p50 = scmp.eq.s32.totalorder %s20, 15
      %p51 = por %p49, %p50
      %p52 = scmp.ne.s32.totalorder %s44, %s47
      %p53 = scmp.eq.s32.totalorder %s20, 0
      %p54 = por %p52, %p53
      %p55 = scmp.ne.s32.totalorder %s44, %s47
      %p56 = scmp.eq.s32.totalorder %s25, 15
      %p57 = por %p55, %p56
      %p58 = scmp.ne.s32.totalorder %s47, %s48
      %p59 = scmp.eq.s32.totalorder %s25, 0
      %p60 = por %p58, %p59
      %p61 = scmp.ne.s32.totalorder %s47, %s48
      %p62 = scmp.eq.s32.totalorder %s26, 15
      %p63 = por %p61, %p62
      %p65 = scmp.ne.s32.totalorder %s48, %s64
      %p66 = scmp.eq.s32.totalorder %s26, 0
      %p67 = por %p65, %p66
      %s68 = ssub.s32 %s27, %s39
      %p69 = scmp.eq.s32.totalorder %s68, 0
      %s71 = sadd.s32 %s70, 1
      %s72 = scalar_select %p69, %s70, %s71
      %p75 = pneg %p69
      %p76 = scmp.eq.s32.totalorder %s20, 15
      %p77 = por %p75, %p76
      %p78 = scmp.ne.s32.totalorder %s70, %s73
      %p79 = scmp.eq.s32.totalorder %s20, 0
      %p80 = por %p78, %p79
      %p81 = scmp.ne.s32.totalorder %s70, %s73
      %p82 = scmp.eq.s32.totalorder %s25, 15
      %p83 = por %p81, %p82
      %p84 = scmp.ne.s32.totalorder %s73, %s74
      %p85 = scmp.eq.s32.totalorder %s25, 0
      %p86 = por %p84, %p85
      %p87 = scmp.ne.s32.totalorder %s73, %s74
      %p88 = scmp.eq.s32.totalorder %s26, 15
      %p89 = por %p87, %p88
      %p91 = scmp.ne.s32.totalorder %s74, %s90
      %p92 = scmp.eq.s32.totalorder %s26, 0
      %p93 = por %p91, %p92
      %s94 = ssub.s32 %s27, %s39
      %s95 = ssub.s32 %s28, %s35
      %s96 = sor.u32 %s94, %s95
      %p97 = scmp.eq.s32.totalorder %s96, 0
      %s99 = sadd.s32 %s98, 1
      %s100 = scalar_select %p97, %s98, %s99
      %p103 = pneg %p97
      %p104 = scmp.eq.s32.totalorder %s20, 15
      %p105 = por %p103, %p104
      %p106 = scmp.ne.s32.totalorder %s98, %s101
      %p107 = scmp.eq.s32.totalorder %s20, 0
      %p108 = por %p106, %p107
      %p109 = scmp.ne.s32.totalorder %s98, %s101
      %p110 = scmp.eq.s32.totalorder %s25, 15
      %p111 = por %p109, %p110
      %p112 = scmp.ne.s32.totalorder %s101, %s102
      %p113 = scmp.eq.s32.totalorder %s25, 0
      %p114 = por %p112, %p113
      %p115 = scmp.ne.s32.totalorder %s101, %s102
      %p116 = scmp.eq.s32.totalorder %s26, 15
      %p117 = por %p115, %p116
      %p119 = scmp.ne.s32.totalorder %s102, %s118
      %p120 = scmp.eq.s32.totalorder %s26, 0
      %p121 = por %p119, %p120
      %s122 = ssub.s32 %s27, %s39
      %p123 = scmp.eq.s32.totalorder %s122, 0
      %s125 = sadd.s32 %s124, 1
      %s126 = scalar_select %p123, %s124, %s125
      %p129 = pneg %p123
      %p130 = scmp.eq.s32.totalorder %s20, 15
      %p131 = por %p129, %p130
      %p132 = scmp.ne.s32.totalorder %s124, %s127
      %p133 = scmp.eq.s32.totalorder %s20, 0
      %p134 = por %p132, %p133
      %p135 = scmp.ne.s32.totalorder %s124, %s127
      %p136 = scmp.eq.s32.totalorder %s25, 15
      %p137 = por %p135, %p136
      %p138 = scmp.ne.s32.totalorder %s127, %s128
      %p139 = scmp.eq.s32.totalorder %s25, 0
      %p140 = por %p138, %p139
      %p141 = scmp.ne.s32.totalorder %s127, %s128
      %p142 = scmp.eq.s32.totalorder %s26, 15
      %p143 = por %p141, %p142
      %p145 = scmp.ne.s32.totalorder %s128, %s144
      %p146 = scmp.eq.s32.totalorder %s26, 0
      %p147 = por %p145, %p146
      %s148 = ssub.s32 %s27, %s39
      %p149 = scmp.eq.s32.totalorder %s148, 0
      %s151 = sadd.s32 %s150, 1
      %s152 = scalar_select %p149, %s150, %s151
      %p155 = pneg %p149
      %p156 = scmp.eq.s32.totalorder %s20, 15
      %p157 = por %p155, %p156
      %p158 = scmp.ne.s32.totalorder %s150, %s153
      %p159 = scmp.eq.s32.totalorder %s20, 0
      %p160 = por %p158, %p159
      %p161 = scmp.ne.s32.totalorder %s150, %s153
      %p162 = scmp.eq.s32.totalorder %s25, 15
      %p163 = por %p161, %p162
      %p164 = scmp.ne.s32.totalorder %s153, %s154
      %p165 = scmp.eq.s32.totalorder %s25, 0
      %p166 = por %p164, %p165
      %p167 = scmp.ne.s32.totalorder %s153, %s154
      %p168 = scmp.eq.s32.totalorder %s26, 15
      %p169 = por %p167, %p168
      %p171 = scmp.ne.s32.totalorder %s154, %s170
      %p172 = scmp.eq.s32.totalorder %s26, 0
      %p173 = por %p171, %p172
      %p174 = scmp.le.s32.totalorder 1, %s20
      %p175 = scmp.lt.s32.totalorder %s20, 17
      %p176 = pnand %p174, %p175
      %p177 = pneg %p176
      // Predicated region
      $region9: #{tpu_custom_call.1} parent=5 // pred_check
        _
      $region10: #{tpu_custom_call.1} parent=5 // pred_check_branch
        %179 = sbr.rel (%p176) target = $region12
      $region11: #{tpu_custom_call.1} parent=5 // pred_region
        %s180 = ssub.s32 %s20, 1
      $region12: #{tpu_custom_call.1} parent=5 // pred_fallthru
        _
      %p181 = scmp.lt.s32.totalorder %s20, 16
      // Predicated region
      $region13: #{tpu_custom_call.1} parent=5 // pred_check
        %p182 = pneg %p181
      $region14: #{tpu_custom_call.1} parent=5 // pred_check_branch
        %184 = sbr.rel (%p182) target = $region16
      $region15: #{tpu_custom_call.1} parent=5 // pred_region
        // Predicated region
        $region17: #{tpu_custom_call.1} parent=15 // pred_check
          %p185 = pneg %p54
        $region18: #{tpu_custom_call.1} parent=15 // pred_check_branch
          %187 = sbr.rel (%p185) target = $region20
        $region19: #{tpu_custom_call.1} parent=15 // pred_region
          %s188 = sand.u32 %s44, 1
          %s189 = scalar_lea.sflag [#allocation3], %s188
          %s190 = sand.u32 %s44, 1
          %s191 = smul.addr %s190, 128
          %s192 = scalar_lea.vmem [#allocation2], %s191
          %s193 = smul.u32 16, %s28
          %195 = vsyncadd %s189, 0
          %s196 = smul.addr %s193, 2
          %s197 = smul.addr %s27, 128
          %s198 = sadd.s32 %s196, %s197
          %s199 = smul.addr %s198, 4
          %s200 = scalar_lea.hbm %s0, %s199
          %s201 = sshll.u32 %s200, 4
          %s202 = int_to_ptr.hbm [resolvable:$true] %s201
          %s203 = sshll.u32 %s192, 4
          %s204 = int_to_ptr.vmem [resolvable:$true] %s203
          %209 = dma.hbm_to_vmem [thread:$0]  %s202, 2048, %s204, %s189, 128, 128, 8
        $region20: #{tpu_custom_call.1} parent=15 // pred_fallthru
          _
        // Predicated region
        $region21: #{tpu_custom_call.1} parent=15 // pred_check
          %p210 = pneg %p80
        $region22: #{tpu_custom_call.1} parent=15 // pred_check_branch
          %212 = sbr.rel (%p210) target = $region24
        $region23: #{tpu_custom_call.1} parent=15 // pred_region
          %p213 = scmp.lt.s32.totalorder %s27, 3
          %s214 = scalar_select %p213, %s27, 3
          %s215 = smul.addr %s214, 32
          %s216 = smul.addr %s215, 4
          %s217 = scalar_lea.vmem %s1, %s216
        $region24: #{tpu_custom_call.1} parent=15 // pred_fallthru
          _
      $region16: #{tpu_custom_call.1} parent=5 // pred_fallthru
        _
      %p218 = scmp.le.s32.totalorder 1, %s20
      %p219 = scmp.lt.s32.totalorder %s20, 17
      %p220 = pnand %p218, %p219
      %p221 = pneg %p220
      // Predicated region
      $region25: #{tpu_custom_call.1} parent=5 // pred_check
        _
      $region26: #{tpu_custom_call.1} parent=5 // pred_check_branch
        %223 = sbr.rel (%p220) target = $region28
      $region27: #{tpu_custom_call.1} parent=5 // pred_region
        %s224 = ssub.s32 %s20, 1
        %s225 = sand.u32 %s47, 1
        %s226 = scalar_lea.sflag [#allocation3], %s225
        %s227 = sand.u32 %s47, 1
        %s228 = smul.addr %s227, 128
        %s229 = scalar_lea.vmem [#allocation2], %s228
        // Predicated region
        $region29: #{tpu_custom_call.1} parent=27 // pred_check
          %p230 = pneg %p60
        $region30: #{tpu_custom_call.1} parent=27 // pred_check_branch
          %232 = sbr.rel (%p230) target = $region32
        $region31: #{tpu_custom_call.1} parent=27 // pred_region
          %234 = dma.done %s226, 2048
        $region32: #{tpu_custom_call.1} parent=27 // pred_fallthru
          _
        %s235 = sand.u32 %s47, 1
        %s236 = scalar_lea.sflag [#allocation3], %s235
        %s237 = sand.u32 %s47, 1
        %s238 = smul.addr %s237, 128
        %s239 = scalar_lea.vmem [#allocation2], %s238
        %p240 = pneg %p60
        %p241 = pneg %p57
        %p242 = scmp.lt.s32.totalorder %s29, 3
        %s243 = scalar_select %p242, %s29, 3
        %s244 = smul.addr %s243, 32
        %s245 = smul.addr %s244, 4
        %s246 = scalar_lea.vmem %s1, %s245
        %p247 = pneg %p86
        %p248 = pneg %p83
        %p249 = pneg %p114
        %p250 = pneg %p111
        %s251 = smul.u32 16, %s30
        %p252 = scmp.lt.s32.totalorder %s29, 3
        %s253 = scalar_select %p252, %s29, 3
        %p254 = scmp.lt.s32.totalorder %s251, 63
        %s255 = scalar_select %p254, %s251, 63
        %s256 = smul.addr %s253, 64
        %s257 = sadd.s32 %s255, %s256
        %s258 = smul.addr %s257, 8
        %s259 = scalar_lea.vmem %s2, %s258
        %p260 = pneg %p140
        %p261 = pneg %p137
        %s262 = sand.u32 %s127, 1
        %s263 = scalar_lea.sflag [#allocation4], %s262
        %s264 = sand.u32 %s127, 1
        %s265 = scalar_lea.vmem [#allocation5], %s264
        %p266 = pneg %p166
        %p267 = pneg %p163
        %s268 = sand.u32 %s153, 1
        %s269 = scalar_lea.sflag [#allocation7], %s268
        %s270 = sand.u32 %s153, 1
        %s271 = scalar_lea.vmem [#allocation6], %s270
        %s272 = smul.u32 16, %s30
        %p273 = scmp.lt.s32.totalorder %s29, 3
        %s274 = scalar_select %p273, %s29, 3
        %s275 = smul.addr %s274, 32
        %s276 = smul.addr %s275, 4
        %s277 = scalar_lea.vmem %s1, %s276
        %s278 = smul.u32 16, %s30
        %p279 = scmp.lt.s32.totalorder %s29, 3
        %s280 = scalar_select %p279, %s29, 3
        %p281 = scmp.lt.s32.totalorder %s278, 63
        %s282 = scalar_select %p281, %s278, 63
        %s283 = smul.addr %s280, 64
        %s284 = sadd.s32 %s282, %s283
        %s285 = smul.addr %s284, 8
        %s286 = scalar_lea.vmem %s2, %s285
        %s287 = smul.u32 16, %s30
        %v288 = vld [vmem:[%s229] sm:$0xff]
        %v289 = vld [vmem:[%s229 + $0x8] sm:$0xff]
        %v290 = vld [vmem:[%s229 + $0x10] sm:$0xff]
        %v291 = vld [vmem:[%s229 + $0x18] sm:$0xff]
        %v292 = vld [vmem:[%s229 + $0x20] sm:$0xff]
        %v293 = vld [vmem:[%s229 + $0x28] sm:$0xff]
        %v294 = vld [vmem:[%s229 + $0x30] sm:$0xff]
        %v295 = vld [vmem:[%s229 + $0x38] sm:$0xff]
        %v296 = vld [vmem:[%s229 + $0x40] sm:$0xff]
        %v297 = vld [vmem:[%s229 + $0x48] sm:$0xff]
        %v298 = vld [vmem:[%s229 + $0x50] sm:$0xff]
        %v299 = vld [vmem:[%s229 + $0x58] sm:$0xff]
        %v300 = vld [vmem:[%s229 + $0x60] sm:$0xff]
        %v301 = vld [vmem:[%s229 + $0x68] sm:$0xff]
        %v302 = vld [vmem:[%s229 + $0x70] sm:$0xff]
        %v303 = vld [vmem:[%s229 + $0x78] sm:$0xff]
        %v304 = vld [vmem:[%s277] sm:$0xf]
        %v305 = vld [vmem:[%s277 + $0x4] sm:$0xf]
        %v306 = vld [vmem:[%s277 + $0x8] sm:$0xf]
        %v307 = vld [vmem:[%s277 + $0xc] sm:$0xf]
        %v308 = vld [vmem:[%s277 + $0x10] sm:$0xf]
        %v309 = vld [vmem:[%s277 + $0x14] sm:$0xf]
        %v310 = vld [vmem:[%s277 + $0x18] sm:$0xf]
        %v311 = vld [vmem:[%s277 + $0x1c] sm:$0xf]
        %v312 = vld [vmem:[%s277 + $0x20] sm:$0xf]
        %v313 = vld [vmem:[%s277 + $0x24] sm:$0xf]
        %v314 = vld [vmem:[%s277 + $0x28] sm:$0xf]
        %v315 = vld [vmem:[%s277 + $0x2c] sm:$0xf]
        %v316 = vld [vmem:[%s277 + $0x30] sm:$0xf]
        %v317 = vld [vmem:[%s277 + $0x34] sm:$0xf]
        %v318 = vld [vmem:[%s277 + $0x38] sm:$0xf]
        %v319 = vld [vmem:[%s277 + $0x3c] sm:$0xf]
        %v320 = vld [vmem:[%s277 + $0x40] sm:$0xf]
        %v321 = vld [vmem:[%s277 + $0x44] sm:$0xf]
        %v322 = vld [vmem:[%s277 + $0x48] sm:$0xf]
        %v323 = vld [vmem:[%s277 + $0x4c] sm:$0xf]
        %v324 = vld [vmem:[%s277 + $0x50] sm:$0xf]
        %v325 = vld [vmem:[%s277 + $0x54] sm:$0xf]
        %v326 = vld [vmem:[%s277 + $0x58] sm:$0xf]
        %v327 = vld [vmem:[%s277 + $0x5c] sm:$0xf]
        %v328 = vld [vmem:[%s277 + $0x60] sm:$0xf]
        %v329 = vld [vmem:[%s277 + $0x64] sm:$0xf]
        %v330 = vld [vmem:[%s277 + $0x68] sm:$0xf]
        %v331 = vld [vmem:[%s277 + $0x6c] sm:$0xf]
        %v332 = vld [vmem:[%s277 + $0x70] sm:$0xf]
        %v333 = vld [vmem:[%s277 + $0x74] sm:$0xf]
        %v334 = vld [vmem:[%s277 + $0x78] sm:$0xf]
        %v335 = vld [vmem:[%s277 + $0x7c] sm:$0xf]
        %v352 = vunpack.c.l.b16 %v288
        %v353 = vunpack.c.h.b16 %v288
        %v354 = vunpack.c.l.b16 %v289
        %v355 = vunpack.c.h.b16 %v289
        %v356 = vunpack.c.l.b16 %v290
        %v357 = vunpack.c.h.b16 %v290
        %v358 = vunpack.c.l.b16 %v291
        %v359 = vunpack.c.h.b16 %v291
        %v360 = vunpack.c.l.b16 %v292
        %v361 = vunpack.c.h.b16 %v292
        %v362 = vunpack.c.l.b16 %v293
        %v363 = vunpack.c.h.b16 %v293
        %v364 = vunpack.c.l.b16 %v294
        %v365 = vunpack.c.h.b16 %v294
        %v366 = vunpack.c.l.b16 %v295
        %v367 = vunpack.c.h.b16 %v295
        %v368 = vunpack.c.l.b16 %v296
        %v369 = vunpack.c.h.b16 %v296
        %v370 = vunpack.c.l.b16 %v297
        %v371 = vunpack.c.h.b16 %v297
        %v372 = vunpack.c.l.b16 %v298
        %v373 = vunpack.c.h.b16 %v298
        %v374 = vunpack.c.l.b16 %v299
        %v375 = vunpack.c.h.b16 %v299
        %v376 = vunpack.c.l.b16 %v300
        %v377 = vunpack.c.h.b16 %v300
        %v378 = vunpack.c.l.b16 %v301
        %v379 = vunpack.c.h.b16 %v301
        %v380 = vunpack.c.l.b16 %v302
        %v381 = vunpack.c.h.b16 %v302
        %v382 = vunpack.c.l.b16 %v303
        %v383 = vunpack.c.h.b16 %v303
        %v384 = vpack.c.b16 %v354, %v352
        %v385 = vpack.c.b16 %v355, %v353
        %v386 = vpack.c.b16 %v358, %v356
        %v387 = vpack.c.b16 %v359, %v357
        %v388 = vpack.c.b16 %v362, %v360
        %v389 = vpack.c.b16 %v363, %v361
        %v390 = vpack.c.b16 %v366, %v364
        %v391 = vpack.c.b16 %v367, %v365
        %v392 = vpack.c.b16 %v370, %v368
        %v393 = vpack.c.b16 %v371, %v369
        %v394 = vpack.c.b16 %v374, %v372
        %v395 = vpack.c.b16 %v375, %v373
        %v396 = vpack.c.b16 %v378, %v376
        %v397 = vpack.c.b16 %v379, %v377
        %v398 = vpack.c.b16 %v382, %v380
        %v399 = vpack.c.b16 %v383, %v381
        %v448 = vunpack.c.l.b16 %v304
        %v449 = vunpack.c.l.b16 %v305
        %v450 = vunpack.c.l.b16 %v306
        %v451 = vunpack.c.l.b16 %v307
        %v452 = vunpack.c.l.b16 %v308
        %v453 = vunpack.c.l.b16 %v309
        %v454 = vunpack.c.l.b16 %v310
        %v455 = vunpack.c.l.b16 %v311
        %v456 = vunpack.c.l.b16 %v312
        %v457 = vunpack.c.l.b16 %v313
        %v458 = vunpack.c.l.b16 %v314
        %v459 = vunpack.c.l.b16 %v315
        %v460 = vunpack.c.l.b16 %v316
        %v461 = vunpack.c.l.b16 %v317
        %v462 = vunpack.c.l.b16 %v318
        %v463 = vunpack.c.l.b16 %v319
        %v464 = vunpack.c.l.b16 %v320
        %v465 = vunpack.c.l.b16 %v321
        %v466 = vunpack.c.l.b16 %v322
        %v467 = vunpack.c.l.b16 %v323
        %v468 = vunpack.c.l.b16 %v324
        %v469 = vunpack.c.l.b16 %v325
        %v470 = vunpack.c.l.b16 %v326
        %v471 = vunpack.c.l.b16 %v327
        %v472 = vunpack.c.l.b16 %v328
        %v473 = vunpack.c.l.b16 %v329
        %v474 = vunpack.c.l.b16 %v330
        %v475 = vunpack.c.l.b16 %v331
        %v476 = vunpack.c.l.b16 %v332
        %v477 = vunpack.c.l.b16 %v333
        %v478 = vunpack.c.l.b16 %v334
        %v479 = vunpack.c.l.b16 %v335
        %v480 = vpack.c.b16 %v449, %v448
        %v481 = vpack.c.b16 %v451, %v450
        %v482 = vpack.c.b16 %v453, %v452
        %v483 = vpack.c.b16 %v455, %v454
        %v484 = vpack.c.b16 %v457, %v456
        %v485 = vpack.c.b16 %v459, %v458
        %v486 = vpack.c.b16 %v461, %v460
        %v487 = vpack.c.b16 %v463, %v462
        %v488 = vpack.c.b16 %v465, %v464
        %v489 = vpack.c.b16 %v467, %v466
        %v490 = vpack.c.b16 %v469, %v468
        %v491 = vpack.c.b16 %v471, %v470
        %v492 = vpack.c.b16 %v473, %v472
        %v493 = vpack.c.b16 %v475, %v474
        %v494 = vpack.c.b16 %v477, %v476
        %v495 = vpack.c.b16 %v479, %v478
        %512 = vmatpush.bf16.msra.mxu0 %v487
        %513 = vmatpush.bf16.msra.mxu0 %v486
        %514 = vmatpush.bf16.msra.mxu0 %v485
        %515 = vmatpush.bf16.msra.mxu0 %v484
        %516 = vmatpush.bf16.msra.mxu0 %v483
        %517 = vmatpush.bf16.msra.mxu0 %v482
        %518 = vmatpush.bf16.msra.mxu0 %v481
        %519 = vmatpush.bf16.msra.mxu0 %v480
        %520 = vmatmul.bf16.gmra.mxu0 %v384
        %v521 = vpop.f32.mrf.mxu0
        %v522 = vadd.f32 0.0, %v521
        %v523 = vpop.f32.mrf.mxu0
        %v524 = vadd.f32 0.0, %v523
        %525 = vmatmul.bf16.gmra.mxu0 %v386
        %v526 = vpop.f32.mrf.mxu0
        %v527 = vadd.f32 0.0, %v526
        %v528 = vpop.f32.mrf.mxu0
        %v529 = vadd.f32 0.0, %v528
        %530 = vmatmul.bf16.gmra.mxu0 %v388
        %v531 = vpop.f32.mrf.mxu0
        %v532 = vadd.f32 0.0, %v531
        %v533 = vpop.f32.mrf.mxu0
        %v534 = vadd.f32 0.0, %v533
        %535 = vmatmul.bf16.gmra.mxu0 %v390
        %v536 = vpop.f32.mrf.mxu0
        %v537 = vadd.f32 0.0, %v536
        %v538 = vpop.f32.mrf.mxu0
        %v539 = vadd.f32 0.0, %v538
        %540 = vmatmul.bf16.gmra.mxu0 %v392
        %v541 = vpop.f32.mrf.mxu0
        %v542 = vadd.f32 0.0, %v541
        %v543 = vpop.f32.mrf.mxu0
        %v544 = vadd.f32 0.0, %v543
        %545 = vmatmul.bf16.gmra.mxu0 %v394
        %v546 = vpop.f32.mrf.mxu0
        %v547 = vadd.f32 0.0, %v546
        %v548 = vpop.f32.mrf.mxu0
        %v549 = vadd.f32 0.0, %v548
        %550 = vmatmul.bf16.gmra.mxu0 %v396
        %v551 = vpop.f32.mrf.mxu0
        %v552 = vadd.f32 0.0, %v551
        %v553 = vpop.f32.mrf.mxu0
        %v554 = vadd.f32 0.0, %v553
        %555 = vmatmul.bf16.gmra.mxu0 %v398
        %v556 = vpop.f32.mrf.mxu0
        %v557 = vadd.f32 0.0, %v556
        %v558 = vpop.f32.mrf.mxu0
        %v559 = vadd.f32 0.0, %v558
        %560 = vdwg.mxu0
        %561 = vmatpush.bf16.msra.mxu0 %v495
        %562 = vmatpush.bf16.msra.mxu0 %v494
        %563 = vmatpush.bf16.msra.mxu0 %v493
        %564 = vmatpush.bf16.msra.mxu0 %v492
        %565 = vmatpush.bf16.msra.mxu0 %v491
        %566 = vmatpush.bf16.msra.mxu0 %v490
        %567 = vmatpush.bf16.msra.mxu0 %v489
        %568 = vmatpush.bf16.msra.mxu0 %v488
        %569 = vmatmul.bf16.gmra.mxu0 %v385
        %v570 = vpop.f32.mrf.mxu0
        %v571 = vadd.f32 %v522, %v570
        %v572 = vpop.f32.mrf.mxu0
        %v573 = vadd.f32 %v524, %v572
        %574 = vmatmul.bf16.gmra.mxu0 %v387
        %v575 = vpop.f32.mrf.mxu0
        %v576 = vadd.f32 %v527, %v575
        %v577 = vpop.f32.mrf.mxu0
        %v578 = vadd.f32 %v529, %v577
        %579 = vmatmul.bf16.gmra.mxu0 %v389
        %v580 = vpop.f32.mrf.mxu0
        %v581 = vadd.f32 %v532, %v580
        %v582 = vpop.f32.mrf.mxu0
        %v583 = vadd.f32 %v534, %v582
        %584 = vmatmul.bf16.gmra.mxu0 %v391
        %v585 = vpop.f32.mrf.mxu0
        %v586 = vadd.f32 %v537, %v585
        %v587 = vpop.f32.mrf.mxu0
        %v588 = vadd.f32 %v539, %v587
        %589 = vmatmul.bf16.gmra.mxu0 %v393
        %v590 = vpop.f32.mrf.mxu0
        %v591 = vadd.f32 %v542, %v590
        %v592 = vpop.f32.mrf.mxu0
        %v593 = vadd.f32 %v544, %v592
        %594 = vmatmul.bf16.gmra.mxu0 %v395
        %v595 = vpop.f32.mrf.mxu0
        %v596 = vadd.f32 %v547, %v595
        %v597 = vpop.f32.mrf.mxu0
        %v598 = vadd.f32 %v549, %v597
        %599 = vmatmul.bf16.gmra.mxu0 %v397
        %v600 = vpop.f32.mrf.mxu0
        %v601 = vadd.f32 %v552, %v600
        %v602 = vpop.f32.mrf.mxu0
        %v603 = vadd.f32 %v554, %v602
        %604 = vmatmul.bf16.gmra.mxu0 %v399
        %v605 = vpop.f32.mrf.mxu0
        %v606 = vadd.f32 %v557, %v605
        %v607 = vpop.f32.mrf.mxu0
        %v608 = vadd.f32 %v559, %v607
        %609 = vdwg.mxu0
        %vm610 = vcmask 261120
        %611 = vst.msk [vmem:[%s286] sm:$0xff] %vm610, %v571
        %612 = vst.msk [vmem:[%s286 + $0x8] sm:$0xff] %vm610, %v573
        %613 = vst.msk [vmem:[%s286 + $0x10] sm:$0xff] %vm610, %v576
        %614 = vst.msk [vmem:[%s286 + $0x18] sm:$0xff] %vm610, %v578
        %615 = vst.msk [vmem:[%s286 + $0x20] sm:$0xff] %vm610, %v581
        %616 = vst.msk [vmem:[%s286 + $0x28] sm:$0xff] %vm610, %v583
        %617 = vst.msk [vmem:[%s286 + $0x30] sm:$0xff] %vm610, %v586
        %618 = vst.msk [vmem:[%s286 + $0x38] sm:$0xff] %vm610, %v588
        %619 = vst.msk [vmem:[%s286 + $0x40] sm:$0xff] %vm610, %v591
        %620 = vst.msk [vmem:[%s286 + $0x48] sm:$0xff] %vm610, %v593
        %621 = vst.msk [vmem:[%s286 + $0x50] sm:$0xff] %vm610, %v596
        %622 = vst.msk [vmem:[%s286 + $0x58] sm:$0xff] %vm610, %v598
        %623 = vst.msk [vmem:[%s286 + $0x60] sm:$0xff] %vm610, %v601
        %624 = vst.msk [vmem:[%s286 + $0x68] sm:$0xff] %vm610, %v603
        %625 = vst.msk [vmem:[%s286 + $0x70] sm:$0xff] %vm610, %v606
        %626 = vst.msk [vmem:[%s286 + $0x78] sm:$0xff] %vm610, %v608
        %p627 = scmp.eq.s32.totalorder %s30, 0
        // Predicated region
        $region33: #{tpu_custom_call.1} parent=27 // pred_check
          %p628 = pneg %p627
        $region34: #{tpu_custom_call.1} parent=27 // pred_check_branch
          %630 = sbr.rel (%p628) target = $region36
        $region35: #{tpu_custom_call.1} parent=27 // pred_region
          %vm631 = vcmask 253952
          %632 = vst.msk [vmem:[%s265] sm:$0x1] %vm631, 0.0
          %633 = vst.msk [vmem:[%s271] sm:$0x1] %vm631, 0.0
        $region36: #{tpu_custom_call.1} parent=27 // pred_fallthru
          _
        %v634 = vld [vmem:[%s265] sm:$0x1]
        %v635 = vsel %vm610, %v571, 0.0
        %v636 = vsel %vm610, %v573, 0.0
        %v637 = vadd.f32 %v635, %v636
        %v638 = vsel %vm610, %v576, 0.0
        %v639 = vadd.f32 %v637, %v638
        %v640 = vsel %vm610, %v578, 0.0
        %v641 = vadd.f32 %v639, %v640
        %v642 = vsel %vm610, %v581, 0.0
        %v643 = vadd.f32 %v641, %v642
        %v644 = vsel %vm610, %v583, 0.0
        %v645 = vadd.f32 %v643, %v644
        %v646 = vsel %vm610, %v586, 0.0
        %v647 = vadd.f32 %v645, %v646
        %v648 = vsel %vm610, %v588, 0.0
        %v649 = vadd.f32 %v647, %v648
        %v650 = vsel %vm610, %v591, 0.0
        %v651 = vadd.f32 %v649, %v650
        %v652 = vsel %vm610, %v593, 0.0
        %v653 = vadd.f32 %v651, %v652
        %v654 = vsel %vm610, %v596, 0.0
        %v655 = vadd.f32 %v653, %v654
        %v656 = vsel %vm610, %v598, 0.0
        %v657 = vadd.f32 %v655, %v656
        %v658 = vsel %vm610, %v601, 0.0
        %v659 = vadd.f32 %v657, %v658
        %v660 = vsel %vm610, %v603, 0.0
        %v661 = vadd.f32 %v659, %v660
        %v662 = vsel %vm610, %v606, 0.0
        %v663 = vadd.f32 %v661, %v662
        %v664 = vsel %vm610, %v608, 0.0
        %v665 = vadd.f32 %v663, %v664
        %v666 = vrot.slane %v665, 4
        %v667 = vadd.f32 %v665, %v666
        %v668 = vrot.slane %v667, 2
        %v669 = vadd.f32 %v667, %v668
        %v670 = vrot.slane %v669, 1
        %v671 = vadd.f32 %v669, %v670
        %v672 = vadd.f32 %v634, %v671
        %vm673 = vcmask 253952
        %674 = vst.msk [vmem:[%s265] sm:$0x1] %vm673, %v672
        %v675 = vld [vmem:[%s271] sm:$0x1]
        %v676 = vmul.f32 %v571, %v571
        %v677 = vmul.f32 %v573, %v573
        %v678 = vmul.f32 %v576, %v576
        %v679 = vmul.f32 %v578, %v578
        %v680 = vmul.f32 %v581, %v581
        %v681 = vmul.f32 %v583, %v583
        %v682 = vmul.f32 %v586, %v586
        %v683 = vmul.f32 %v588, %v588
        %v684 = vmul.f32 %v591, %v591
        %v685 = vmul.f32 %v593, %v593
        %v686 = vmul.f32 %v596, %v596
        %v687 = vmul.f32 %v598, %v598
        %v688 = vmul.f32 %v601, %v601
        %v689 = vmul.f32 %v603, %v603
        %v690 = vmul.f32 %v606, %v606
        %v691 = vmul.f32 %v608, %v608
        %v692 = vsel %vm610, %v676, 0.0
        %v693 = vsel %vm610, %v677, 0.0
        %v694 = vadd.f32 %v692, %v693
        %v695 = vsel %vm610, %v678, 0.0
        %v696 = vadd.f32 %v694, %v695
        %v697 = vsel %vm610, %v679, 0.0
        %v698 = vadd.f32 %v696, %v697
        %v699 = vsel %vm610, %v680, 0.0
        %v700 = vadd.f32 %v698, %v699
        %v701 = vsel %vm610, %v681, 0.0
        %v702 = vadd.f32 %v700, %v701
        %v703 = vsel %vm610, %v682, 0.0
        %v704 = vadd.f32 %v702, %v703
        %v705 = vsel %vm610, %v683, 0.0
        %v706 = vadd.f32 %v704, %v705
        %v707 = vsel %vm610, %v684, 0.0
        %v708 = vadd.f32 %v706, %v707
        %v709 = vsel %vm610, %v685, 0.0
        %v710 = vadd.f32 %v708, %v709
        %v711 = vsel %vm610, %v686, 0.0
        %v712 = vadd.f32 %v710, %v711
        %v713 = vsel %vm610, %v687, 0.0
        %v714 = vadd.f32 %v712, %v713
        %v715 = vsel %vm610, %v688, 0.0
        %v716 = vadd.f32 %v714, %v715
        %v717 = vsel %vm610, %v689, 0.0
        %v718 = vadd.f32 %v716, %v717
        %v719 = vsel %vm610, %v690, 0.0
        %v720 = vadd.f32 %v718, %v719
        %v721 = vsel %vm610, %v691, 0.0
        %v722 = vadd.f32 %v720, %v721
        %v723 = vrot.slane %v722, 4
        %v724 = vadd.f32 %v722, %v723
        %v725 = vrot.slane %v724, 2
        %v726 = vadd.f32 %v724, %v725
        %v727 = vrot.slane %v726, 1
        %v728 = vadd.f32 %v726, %v727
        %v729 = vadd.f32 %v675, %v728
        %730 = vst.msk [vmem:[%s271] sm:$0x1] %vm673, %v729
        %s731 = smul.u32 16, %s30
        %p732 = scmp.lt.s32.totalorder %s29, 3
        %s733 = scalar_select %p732, %s29, 3
        %p734 = scmp.lt.s32.totalorder %s731, 63
        %s735 = scalar_select %p734, %s731, 63
        %s736 = smul.addr %s733, 64
        %s737 = sadd.s32 %s735, %s736
        %s738 = smul.addr %s737, 8
        %s739 = scalar_lea.vmem %s2, %s738
        %s740 = sand.u32 %s127, 1
        %s741 = scalar_lea.sflag [#allocation4], %s740
        %s742 = sand.u32 %s127, 1
        %s743 = scalar_lea.vmem [#allocation5], %s742
        %s744 = sand.u32 %s153, 1
        %s745 = scalar_lea.sflag [#allocation7], %s744
        %s746 = sand.u32 %s153, 1
        %s747 = scalar_lea.vmem [#allocation6], %s746
        // Predicated region
        $region37: #{tpu_custom_call.1} parent=27 // pred_check
          %p748 = pneg %p111
        $region38: #{tpu_custom_call.1} parent=27 // pred_check_branch
          %750 = sbr.rel (%p748) target = $region40
        $region39: #{tpu_custom_call.1} parent=27 // pred_region
          %s751 = smul.u32 16, %s30
        $region40: #{tpu_custom_call.1} parent=27 // pred_fallthru
          _
        // Predicated region
        $region41: #{tpu_custom_call.1} parent=27 // pred_check
          %p752 = pneg %p137
        $region42: #{tpu_custom_call.1} parent=27 // pred_check_branch
          %754 = sbr.rel (%p752) target = $region44
        $region43: #{tpu_custom_call.1} parent=27 // pred_region
          %756 = vsyncadd %s741, 0
          %s757 = scalar_lea.hbm %s3, %s29
          %s759 = sshll.u32 %s743, 4
          %s760 = int_to_ptr.vmem [resolvable:$true] %s759
          %s761 = sshll.u32 %s757, 4
          %s762 = int_to_ptr.hbm [resolvable:$true] %s761
          %764 = dma.vmem_to_hbm [thread:$0]  %s760, 16, %s762, %s741
        $region44: #{tpu_custom_call.1} parent=27 // pred_fallthru
          _
        // Predicated region
        $region45: #{tpu_custom_call.1} parent=27 // pred_check
          %p765 = pneg %p163
        $region46: #{tpu_custom_call.1} parent=27 // pred_check_branch
          %767 = sbr.rel (%p765) target = $region48
        $region47: #{tpu_custom_call.1} parent=27 // pred_region
          %769 = vsyncadd %s745, 0
          %s770 = scalar_lea.hbm %s4, %s29
          %s772 = sshll.u32 %s747, 4
          %s773 = int_to_ptr.vmem [resolvable:$true] %s772
          %s774 = sshll.u32 %s770, 4
          %s775 = int_to_ptr.hbm [resolvable:$true] %s774
          %777 = dma.vmem_to_hbm [thread:$0]  %s773, 16, %s775, %s745
        $region48: #{tpu_custom_call.1} parent=27 // pred_fallthru
          _
      $region28: #{tpu_custom_call.1} parent=5 // pred_fallthru
        _
      %p778 = scmp.le.s32.totalorder 2, %s20
      // Predicated region
      $region49: #{tpu_custom_call.1} parent=5 // pred_check
        %p779 = pneg %p778
      $region50: #{tpu_custom_call.1} parent=5 // pred_check_branch
        %781 = sbr.rel (%p779) target = $region52
      $region51: #{tpu_custom_call.1} parent=5 // pred_region
        %s782 = ssub.s32 %s20, 2
        // Predicated region
        $region53: #{tpu_custom_call.1} parent=51 // pred_check
          %p783 = pneg %p117
        $region54: #{tpu_custom_call.1} parent=51 // pred_check_branch
          %785 = sbr.rel (%p783) target = $region56
        $region55: #{tpu_custom_call.1} parent=51 // pred_region
          %s786 = smul.u32 16, %s32
          %p787 = scmp.lt.s32.totalorder %s31, 3
          %s788 = scalar_select %p787, %s31, 3
          %p789 = scmp.lt.s32.totalorder %s786, 63
          %s790 = scalar_select %p789, %s786, 63
          %s791 = smul.addr %s788, 64
          %s792 = sadd.s32 %s790, %s791
          %s793 = smul.addr %s792, 8
          %s794 = scalar_lea.vmem %s2, %s793
        $region56: #{tpu_custom_call.1} parent=51 // pred_fallthru
          _
        // Predicated region
        $region57: #{tpu_custom_call.1} parent=51 // pred_check
          %p795 = pneg %p143
        $region58: #{tpu_custom_call.1} parent=51 // pred_check_branch
          %797 = sbr.rel (%p795) target = $region60
        $region59: #{tpu_custom_call.1} parent=51 // pred_region
          %s798 = sand.u32 %s128, 1
          %s799 = scalar_lea.sflag [#allocation4], %s798
          %s800 = sand.u32 %s128, 1
          %s801 = scalar_lea.vmem [#allocation5], %s800
          %803 = dma.done %s799, 16
        $region60: #{tpu_custom_call.1} parent=51 // pred_fallthru
          _
        // Predicated region
        $region61: #{tpu_custom_call.1} parent=51 // pred_check
          %p804 = pneg %p169
        $region62: #{tpu_custom_call.1} parent=51 // pred_check_branch
          %806 = sbr.rel (%p804) target = $region64
        $region63: #{tpu_custom_call.1} parent=51 // pred_region
          %s807 = sand.u32 %s154, 1
          %s808 = scalar_lea.sflag [#allocation7], %s807
          %s809 = sand.u32 %s154, 1
          %s810 = scalar_lea.vmem [#allocation6], %s809
          %812 = dma.done %s808, 16
        $region64: #{tpu_custom_call.1} parent=51 // pred_fallthru
          _
      $region52: #{tpu_custom_call.1} parent=5 // pred_fallthru
        _
    $region6: #{tpu_custom_call.1} parent=1 // loop_footer
      %s24 = sadd.s32 1, %s20
    $region7: #{tpu_custom_call.1} parent=1 // loop_footer_branch
      %19 = sbr.rel target = $region3
    $region8: #{tpu_custom_call.1} parent=1 // loop_exit
      _
    %813 = vsyncpa [#allocation3], 1
    %s814 = scalar_lea.sflag [#allocation3], 1
    %815 = vsyncpa %s814, 1
    %816 = vsyncpa [#allocation4], 1
    %s817 = scalar_lea.sflag [#allocation4], 1
    %818 = vsyncpa %s817, 1
    %819 = vsyncpa [#allocation7], 1
    %s820 = scalar_lea.sflag [#allocation7], 1
    %821 = vsyncpa %s820, 1

</llo_original>
